<compile_context>
chip_gen: v5e
topology: v5e:2x2
jax: 0.10.0
libtpu: 0.0.40
codegen_flags: <defaults>
</compile_context>

<pallas_src>
import math
import jax
import jax.numpy as jnp
from jax.experimental import pallas as pl
from jax.experimental.pallas import tpu as pltpu

# ----- small, BERT-like synthetic sizes -----
BATCH = 2
SEQ = 8
NUM_HEADS = 12             # matches nn.MultiheadAttention(embed_dim, 12, ...)
HEAD_DIM = 4
EMBED = NUM_HEADS * HEAD_DIM   # 48
VOCAB = 100

LANE = 128
PAD_E = ((EMBED + LANE - 1) // LANE) * LANE     # 128: aligned q/k/v column stride
PAD_OUT = ((EMBED + LANE - 1) // LANE) * LANE   # 128: lane-dense output width


def _mhsa_kernel(x_ref, w_in_t_ref, b_in_ref, head_proj_ref,
                 w_out_t_ref, b_out_ref, o_ref):
    """Multi-head self-attention for the whole batch (single grid point).

    x_ref:         (B, L, E)        VMEM
    w_in_t_ref:    (E, 3*PAD_E)     VMEM  (pre-transposed, q-block pre-scaled,
                                           q/k/v at 128-aligned column offsets)
    b_in_ref:      (1, 3*PAD_E)     VMEM
    head_proj_ref: (E, E)           VMEM  (head_proj[e', e] = [head(e')==head(e)])
    w_out_t_ref:   (E, PAD_OUT)     VMEM  (pre-transposed, zero-padded out_proj)
    b_out_ref:     (1, PAD_OUT)     VMEM
    o_ref:         (B, L, PAD_OUT)  VMEM  (lane-dense; wrapper slices [:E])
    """
    B, L, E = x_ref.shape
    pad_e = w_in_t_ref.shape[1] // 3
    R = B * L

    # ---- fused QKV in-projection: one lane-dense MXU matmul -------------
    x2d = x_ref[...].reshape(R, E)                               # leading-dim collapse
    qkv = jnp.dot(x2d, w_in_t_ref[...],
                  preferred_element_type=jnp.float32) + b_in_ref[...]
    # 128-aligned static slices (1/sqrt(Dh) already folded into the q block)
    q = qkv[:, 0:E].reshape(B, L, E)
    k = qkv[:, pad_e:pad_e + E].reshape(B, L, E)
    v = qkv[:, 2 * pad_e:2 * pad_e + E].reshape(B, L, E)

    # ---- scores: VPU broadcast-multiply + one head-projection matmul ----
    # s_full[b,l,m,e] = sum_{e' in head(e)} q[b,l,e'] * k[b,m,e']
    # (per-head score replicated across that head's lanes -> stays lane-dense)
    prod = q[:, :, None, :] * k[:, None, :, :]                   # (B, L, L, E)
    s_full = jnp.dot(prod.reshape(R * L, E), head_proj_ref[...],
                     preferred_element_type=jnp.float32).reshape(B, L, L, E)

    # ---- softmax over keys (axis=2). Lane-replicated per head, so per-lane
    # reductions equal per-head reductions. Exact divide (EUP has slack). ---
    m = jnp.max(s_full, axis=2, keepdims=True)
    p = jnp.exp(s_full - m)
    p = p / jnp.sum(p, axis=2, keepdims=True)

    # ---- context: weight values by lane-replicated per-head probs --------
    ctx = jnp.sum(p * v[:, None, :, :], axis=2)                  # (B, L, E)

    # ---- lane-dense output projection (PAD_OUT >= 128 -> unmasked vst) ---
    out = jnp.dot(ctx.reshape(R, E), w_out_t_ref[...],
                  preferred_element_type=jnp.float32) + b_out_ref[...]
    o_ref[...] = out.reshape(B, L, -1).astype(o_ref.dtype)


def preprocess_mhsa_params(w_in, b_in, w_out, b_out, dtype=jnp.float32):
    """One-time weight re-layout, hoisted out of the per-call hot path.

    w_in:  (3*E, E) PyTorch in_proj_weight (rows = output features)
    b_in:  (3*E,)
    w_out: (E, E)   PyTorch out_proj.weight
    b_out: (E,)
    """
    E, Dh = EMBED, HEAD_DIM
    scale = 1.0 / math.sqrt(Dh)

    w_q, w_k, w_v = w_in[0:E], w_in[E:2 * E], w_in[2 * E:3 * E]
    w_in_t = jnp.zeros((E, 3 * PAD_E), dtype)
    w_in_t = w_in_t.at[:, 0:E].set(w_q.T * scale)
    w_in_t = w_in_t.at[:, PAD_E:PAD_E + E].set(w_k.T)
    w_in_t = w_in_t.at[:, 2 * PAD_E:2 * PAD_E + E].set(w_v.T)

    b_in_p = jnp.zeros((1, 3 * PAD_E), dtype)
    b_in_p = b_in_p.at[0, 0:E].set(b_in[0:E] * scale)
    b_in_p = b_in_p.at[0, PAD_E:PAD_E + E].set(b_in[E:2 * E])
    b_in_p = b_in_p.at[0, 2 * PAD_E:2 * PAD_E + E].set(b_in[2 * E:3 * E])

    # head_proj[e', e] = 1 iff e' and e belong to the same head
    head_ids = jnp.arange(E) // Dh
    head_proj = (head_ids[:, None] == head_ids[None, :]).astype(dtype)

    # lane-dense out-projection: zero-pad w_out^T / bias to PAD_OUT columns
    w_out_t_p = jnp.zeros((E, PAD_OUT), dtype).at[:, 0:E].set(w_out.T)
    b_out_p = jnp.zeros((1, PAD_OUT), dtype).at[0, 0:E].set(b_out)

    return {"w_in_t": w_in_t, "b_in_p": b_in_p, "head_proj": head_proj,
            "w_out_t_p": w_out_t_p, "b_out_p": b_out_p}


def mhsa_pallas(x, mhsa_params):
    """x: (B, L, E) float32. mhsa_params: output of preprocess_mhsa_params.

    Single pallas_call, whole batch in one grid point.  To amortize the fixed
    launch/DMA overhead, callers should fold as many questions as possible
    into B before calling (one call per batch, not per question).
    """
    B, L, E = x.shape
    w_in_t = mhsa_params["w_in_t"]
    b_in_p = mhsa_params["b_in_p"]
    head_proj = mhsa_params["head_proj"]
    w_out_t_p = mhsa_params["w_out_t_p"]
    b_out_p = mhsa_params["b_out_p"]

    # ---- advisory cost estimate ------------------------------------------
    flops = (2 * B * L * E * w_in_t.shape[1]    # qkv projection
             + B * L * L * E                    # q*k broadcast multiply
             + 2 * B * L * L * E * E            # head-projection matmul
             + 2 * B * L * L * E                # p * v + key reduction
             + 2 * B * L * E * PAD_OUT)         # out projection
    transcendentals = B * L * L * E             # exp
    bytes_accessed = 4 * (x.size + w_in_t.size + b_in_p.size + head_proj.size
                          + w_out_t_p.size + b_out_p.size + B * L * PAD_OUT)

    out_padded = pl.pallas_call(
        _mhsa_kernel,
        out_shape=jax.ShapeDtypeStruct((B, L, PAD_OUT), x.dtype),
        grid=(1,),
        in_specs=[
            pl.BlockSpec((B, L, E), lambda i: (0, 0, 0)),
            pl.BlockSpec(w_in_t.shape, lambda i: (0, 0)),
            pl.BlockSpec(b_in_p.shape, lambda i: (0, 0)),
            pl.BlockSpec(head_proj.shape, lambda i: (0, 0)),
            pl.BlockSpec(w_out_t_p.shape, lambda i: (0, 0)),
            pl.BlockSpec(b_out_p.shape, lambda i: (0, 0)),
        ],
        out_specs=pl.BlockSpec((B, L, PAD_OUT), lambda i: (0, 0, 0)),
        compiler_params=pltpu.CompilerParams(
            dimension_semantics=("arbitrary",)),
        cost_estimate=pl.CostEstimate(flops=flops,
                                      transcendentals=transcendentals,
                                      bytes_accessed=bytes_accessed),
    )(x, w_in_t, b_in_p, head_proj, w_out_t_p, b_out_p)

    return out_padded[..., :E]


def bert_question_embedding_forward(tokens, params, mhsa_params):
    """Mirrors BertQuestionEmbedding.forward(tokens) with use_mhsa=True."""
    # TODO(synk): the pretrained HuggingFace BERT encoder (AutoModel) is an
    # external checkpoint with no clean Pallas equivalent; a deterministic
    # embedding lookup stands in for output.last_hidden_state.
    last_hidden_state = params["embedding_table"][tokens["input_ids"]]  # (B,L,E)
    return mhsa_pallas(last_hidden_state, mhsa_params)


def _reference_mhsa(x, w_in, b_in, w_out, b_out):
    B, L, E = x.shape
    H, Dh = NUM_HEADS, E // NUM_HEADS
    qkv = jnp.einsum('ble,fe->blf', x, w_in) + b_in
    q, k, v = jnp.split(qkv, 3, axis=-1)
    q = q.reshape(B, L, H, Dh)
    k = k.reshape(B, L, H, Dh)
    v = v.reshape(B, L, H, Dh)
    s = jnp.einsum('blhd,bmhd->bhlm', q, k) / math.sqrt(Dh)
    p = jax.nn.softmax(s, axis=-1)
    ctx = jnp.einsum('bhlm,bmhd->blhd', p, v).reshape(B, L, E)
    return jnp.einsum('ble,fe->blf', ctx, w_out) + b_out


if __name__ == "__main__":
    key = jax.random.PRNGKey(0)
    k_emb, k_win, k_bin, k_wout, k_bout, k_tok = jax.random.split(key, 6)

    params = {
        "embedding_table": jax.random.normal(k_emb, (VOCAB, EMBED), jnp.float32) * 0.1,
        "in_proj_weight":  jax.random.normal(k_win, (3 * EMBED, EMBED), jnp.float32) * 0.1,
        "in_proj_bias":    jax.random.normal(k_bin, (3 * EMBED,), jnp.float32) * 0.1,
        "out_proj_weight": jax.random.normal(k_wout, (EMBED, EMBED), jnp.float32) * 0.1,
        "out_proj_bias":   jax.random.normal(k_bout, (EMBED,), jnp.float32) * 0.1,
    }

    # One-time parameter preprocessing (hoisted out of the forward hot path).
    mhsa_params = preprocess_mhsa_params(
        params["in_proj_weight"], params["in_proj_bias"],
        params["out_proj_weight"], params["out_proj_bias"])
    mhsa_params = jax.tree_util.tree_map(jax.block_until_ready, mhsa_params)

    tokens = {
        "input_ids": jax.random.randint(k_tok, (BATCH, SEQ), 0, VOCAB),
        "attention_mask": jnp.ones((BATCH, SEQ), jnp.int32),
    }

    out = bert_question_embedding_forward(tokens, params, mhsa_params)
    out = jax.block_until_ready(out)

    # correctness check vs plain-JAX reference
    x = params["embedding_table"][tokens["input_ids"]]
    ref = _reference_mhsa(x, params["in_proj_weight"], params["in_proj_bias"],
                          params["out_proj_weight"], params["out_proj_bias"])
    assert out.shape == (BATCH, SEQ, EMBED)
    assert jnp.allclose(out, ref, atol=1e-3, rtol=1e-3)

    print("KERNEL_OK")
</pallas_src>

<mosaic_0001>
module attributes {stable_mosaic.version = 11 : i64} {
  func.func @_mhsa_kernel(%arg0: i32, %arg1: memref<2x8x48xf32, #tpu.memory_space<vmem>>, %arg2: memref<48x384xf32, #tpu.memory_space<vmem>>, %arg3: memref<1x384xf32, #tpu.memory_space<vmem>>, %arg4: memref<48x48xf32, #tpu.memory_space<vmem>>, %arg5: memref<48x128xf32, #tpu.memory_space<vmem>>, %arg6: memref<1x128xf32, #tpu.memory_space<vmem>>, %arg7: memref<2x8x128xf32, #tpu.memory_space<vmem>>) attributes {dimension_semantics = [#tpu.dimension_semantics<arbitrary>], iteration_bounds = array<i64: 1>, scalar_prefetch = 0 : i64, scratch_operands = 0 : i64, tpu.core_type = #tpu.core_type<tc>, window_params = [{pipeline_mode = #tpu.pipeline_mode<synchronous>, transform_indices = @transform_0, window_bounds = array<i64: 2, 8, 48>}, {pipeline_mode = #tpu.pipeline_mode<synchronous>, transform_indices = @transform_1, window_bounds = array<i64: 48, 384>}, {pipeline_mode = #tpu.pipeline_mode<synchronous>, transform_indices = @transform_2, window_bounds = array<i64: 1, 384>}, {pipeline_mode = #tpu.pipeline_mode<synchronous>, transform_indices = @transform_3, window_bounds = array<i64: 48, 48>}, {pipeline_mode = #tpu.pipeline_mode<synchronous>, transform_indices = @transform_4, window_bounds = array<i64: 48, 128>}, {pipeline_mode = #tpu.pipeline_mode<synchronous>, transform_indices = @transform_5, window_bounds = array<i64: 1, 128>}, {pipeline_mode = #tpu.pipeline_mode<synchronous>, transform_indices = @transform_6, window_bounds = array<i64: 2, 8, 128>}]} {
    %c0 = arith.constant 0 : index
    %c0_0 = arith.constant 0 : index
    %c0_1 = arith.constant 0 : index
    %0 = vector.load %arg1[%c0, %c0_0, %c0_1] : memref<2x8x48xf32, #tpu.memory_space<vmem>>, vector<2x8x48xf32>
    %1 = vector.shape_cast %0 : vector<2x8x48xf32> to vector<16x48xf32>
    %c0_2 = arith.constant 0 : index
    %c0_3 = arith.constant 0 : index
    %2 = vector.load %arg2[%c0_2, %c0_3] : memref<48x384xf32, #tpu.memory_space<vmem>>, vector<48x384xf32>
    %cst = arith.constant dense<0.000000e+00> : vector<16x384xf32>
    %3 = tpu.matmul %1, %2, %cst {dimension_numbers = #tpu.dot_dimension_numbers<[1], [0], [0], [1], [0, 0, 1, 1], [], []>} : vector<16x48xf32>, vector<48x384xf32>, vector<16x384xf32> -> vector<16x384xf32>
    %c0_4 = arith.constant 0 : index
    %c0_5 = arith.constant 0 : index
    %4 = vector.load %arg3[%c0_4, %c0_5] : memref<1x384xf32, #tpu.memory_space<vmem>>, vector<1x384xf32>
    %5 = vector.broadcast %4 : vector<1x384xf32> to vector<16x384xf32>
    %6 = arith.addf %3, %5 : vector<16x384xf32>
    %7 = vector.extract_strided_slice %6 {offsets = [0, 0], sizes = [16, 48], strides = [1, 1]} : vector<16x384xf32> to vector<16x48xf32>
    %8 = vector.shape_cast %7 : vector<16x48xf32> to vector<2x8x48xf32>
    %9 = vector.extract_strided_slice %6 {offsets = [0, 128], sizes = [16, 48], strides = [1, 1]} : vector<16x384xf32> to vector<16x48xf32>
    %10 = vector.shape_cast %9 : vector<16x48xf32> to vector<2x8x48xf32>
    %11 = vector.extract_strided_slice %6 {offsets = [0, 256], sizes = [16, 48], strides = [1, 1]} : vector<16x384xf32> to vector<16x48xf32>
    %12 = vector.shape_cast %11 : vector<16x48xf32> to vector<2x8x48xf32>
    %13 = vector.shape_cast %8 : vector<2x8x48xf32> to vector<2x8x1x48xf32>
    %14 = vector.shape_cast %10 : vector<2x8x48xf32> to vector<2x1x8x48xf32>
    %15 = vector.broadcast %13 : vector<2x8x1x48xf32> to vector<2x8x8x48xf32>
    %16 = vector.broadcast %14 : vector<2x1x8x48xf32> to vector<2x8x8x48xf32>
    %17 = arith.mulf %15, %16 : vector<2x8x8x48xf32>
    %18 = vector.shape_cast %17 : vector<2x8x8x48xf32> to vector<128x48xf32>
    %c0_6 = arith.constant 0 : index
    %c0_7 = arith.constant 0 : index
    %19 = vector.load %arg4[%c0_6, %c0_7] : memref<48x48xf32, #tpu.memory_space<vmem>>, vector<48x48xf32>
    %cst_8 = arith.constant dense<0.000000e+00> : vector<128x48xf32>
    %20 = tpu.matmul %18, %19, %cst_8 {dimension_numbers = #tpu.dot_dimension_numbers<[1], [0], [0], [1], [0, 0, 1, 1], [], []>} : vector<128x48xf32>, vector<48x48xf32>, vector<128x48xf32> -> vector<128x48xf32>
    %21 = vector.shape_cast %20 : vector<128x48xf32> to vector<2x8x8x48xf32>
    %cst_9 = arith.constant dense<0xFF800000> : vector<2x8x48xf32>
    %22 = vector.multi_reduction <maximumf>, %21, %cst_9 [2] : vector<2x8x8x48xf32> to vector<2x8x48xf32>
    %23 = vector.shape_cast %22 : vector<2x8x48xf32> to vector<2x8x1x48xf32>
    %24 = vector.broadcast %23 : vector<2x8x1x48xf32> to vector<2x8x8x48xf32>
    %25 = arith.subf %21, %24 : vector<2x8x8x48xf32>
    %26 = math.exp %25 : vector<2x8x8x48xf32>
    %cst_10 = arith.constant dense<0.000000e+00> : vector<2x8x48xf32>
    %27 = vector.multi_reduction <add>, %26, %cst_10 [2] : vector<2x8x8x48xf32> to vector<2x8x48xf32>
    %28 = vector.shape_cast %27 : vector<2x8x48xf32> to vector<2x8x1x48xf32>
    %29 = vector.broadcast %28 : vector<2x8x1x48xf32> to vector<2x8x8x48xf32>
    %30 = arith.divf %26, %29 : vector<2x8x8x48xf32>
    %31 = vector.shape_cast %12 : vector<2x8x48xf32> to vector<2x1x8x48xf32>
    %32 = vector.broadcast %31 : vector<2x1x8x48xf32> to vector<2x8x8x48xf32>
    %33 = arith.mulf %30, %32 : vector<2x8x8x48xf32>
    %cst_11 = arith.constant dense<0.000000e+00> : vector<2x8x48xf32>
    %34 = vector.multi_reduction <add>, %33, %cst_11 [2] : vector<2x8x8x48xf32> to vector<2x8x48xf32>
    %35 = vector.shape_cast %34 : vector<2x8x48xf32> to vector<16x48xf32>
    %c0_12 = arith.constant 0 : index
    %c0_13 = arith.constant 0 : index
    %36 = vector.load %arg5[%c0_12, %c0_13] : memref<48x128xf32, #tpu.memory_space<vmem>>, vector<48x128xf32>
    %cst_14 = arith.constant dense<0.000000e+00> : vector<16x128xf32>
    %37 = tpu.matmul %35, %36, %cst_14 {dimension_numbers = #tpu.dot_dimension_numbers<[1], [0], [0], [1], [0, 0, 1, 1], [], []>} : vector<16x48xf32>, vector<48x128xf32>, vector<16x128xf32> -> vector<16x128xf32>
    %c0_15 = arith.constant 0 : index
    %c0_16 = arith.constant 0 : index
    %38 = vector.load %arg6[%c0_15, %c0_16] : memref<1x128xf32, #tpu.memory_space<vmem>>, vector<1x128xf32>
    %39 = vector.broadcast %38 : vector<1x128xf32> to vector<16x128xf32>
    %40 = arith.addf %37, %39 : vector<16x128xf32>
    %41 = vector.shape_cast %40 : vector<16x128xf32> to vector<2x8x128xf32>
    %c0_17 = arith.constant 0 : index
    %c0_18 = arith.constant 0 : index
    %c0_19 = arith.constant 0 : index
    %42 = vector.load %arg7[%c0_17, %c0_18, %c0_19] : memref<2x8x128xf32, #tpu.memory_space<vmem>>, vector<2x8x128xf32>
    tpu.vector_store %arg7[%c0_17, %c0_18, %c0_19], %41 {strides = array<i32>} : memref<2x8x128xf32, #tpu.memory_space<vmem>>, vector<2x8x128xf32>,
    return
  }
  func.func @transform_0(%arg0: i32) -> (i32, i32, i32) {
    %c0_i32 = arith.constant 0 : i32
    %c0_i32_0 = arith.constant 0 : i32
    %c0_i32_1 = arith.constant 0 : i32
    %c0_i32_2 = arith.constant 0 : i32
    return %c0_i32, %c0_i32_0, %c0_i32_1 : i32, i32, i32
  }
  func.func @transform_1(%arg0: i32) -> (i32, i32) {
    %c0_i32 = arith.constant 0 : i32
    %c0_i32_0 = arith.constant 0 : i32
    %c0_i32_1 = arith.constant 0 : i32
    return %c0_i32, %c0_i32_0 : i32, i32
  }
  func.func @transform_2(%arg0: i32) -> (i32, i32) {
    %c0_i32 = arith.constant 0 : i32
    %c0_i32_0 = arith.constant 0 : i32
    %c0_i32_1 = arith.constant 0 : i32
    return %c0_i32, %c0_i32_0 : i32, i32
  }
  func.func @transform_3(%arg0: i32) -> (i32, i32) {
    %c0_i32 = arith.constant 0 : i32
    %c0_i32_0 = arith.constant 0 : i32
    %c0_i32_1 = arith.constant 0 : i32
    return %c0_i32, %c0_i32_0 : i32, i32
  }
  func.func @transform_4(%arg0: i32) -> (i32, i32) {
    %c0_i32 = arith.constant 0 : i32
    %c0_i32_0 = arith.constant 0 : i32
    %c0_i32_1 = arith.constant 0 : i32
    return %c0_i32, %c0_i32_0 : i32, i32
  }
  func.func @transform_5(%arg0: i32) -> (i32, i32) {
    %c0_i32 = arith.constant 0 : i32
    %c0_i32_0 = arith.constant 0 : i32
    %c0_i32_1 = arith.constant 0 : i32
    return %c0_i32, %c0_i32_0 : i32, i32
  }
  func.func @transform_6(%arg0: i32) -> (i32, i32, i32) {
    %c0_i32 = arith.constant 0 : i32
    %c0_i32_0 = arith.constant 0 : i32
    %c0_i32_1 = arith.constant 0 : i32
    %c0_i32_2 = arith.constant 0 : i32
    return %c0_i32, %c0_i32_0, %c0_i32_1 : i32, i32, i32
  }
}

</mosaic_0001>

<llo_original>
// kernel: tpu_custom_call.1
$region0: #{tpu_custom_call.1}
  #allocation0 [shape = 'u32[]', space=smem, size = 0x4, offset = 0x4, fixed_abs, tag = 'smem constant byte address 0x4 - core index']
  #allocation1 [shape = 'u32[72,128]{1,0:T(1,128)}', space=vmem, size = 0x9000, scoped, tag = 'internal scratch']
  %s0 = inlined_call_operand.hbm [shape: f32[2,8,48], index: 0, kind: input, shape index: {}]
  %s1 = inlined_call_operand.hbm [shape: f32[48,384], index: 1, kind: input, shape index: {}]
  %s2 = inlined_call_operand.hbm [shape: f32[1,384], index: 2, kind: input, shape index: {}]
  %s3 = inlined_call_operand.hbm [shape: f32[48,48], index: 3, kind: input, shape index: {}]
  %s4 = inlined_call_operand.hbm [shape: f32[48,128], index: 4, kind: input, shape index: {}]
  %s5 = inlined_call_operand.vmem [shape: f32[1,128], index: 5, kind: input, shape index: {}]
  %s6 = inlined_call_operand.hbm [shape: f32[2,8,128], index: 6, kind: output, shape index: {}]
  %s7 = sld [smem:[#allocation0]]
  $region54: #{tpu_custom_call.1} parent=0
    _
  %s9 = ssub.s32 1, %s7
  %s10 = scalar_select 0, %s9, %s7
  $region1: #{tpu_custom_call.1} parent=0
    #allocation2 [shape = 'u8[8192]{0}', space=vmem, size = 0x2000, scoped, tag = 'input window, operand 0, single buffered']
    #allocation3 [shape = 's32[1]{0}', space=sflag, size = 0x4, scoped, tag = 'scoped memory for tpu_custom_call.1']
    #allocation4 [shape = 's32[1]{0}', space=sflag, size = 0x4, scoped, tag = 'scoped memory for tpu_custom_call.1']
    #allocation5 [shape = 'u8[73728]{0}', space=vmem, size = 0x12000, scoped, tag = 'input window, operand 1, single buffered']
    #allocation6 [shape = 's32[1]{0}', space=sflag, size = 0x4, scoped, tag = 'scoped memory for tpu_custom_call.1']
    #allocation7 [shape = 'u8[1536]{0}', space=vmem, size = 0x800, scoped, tag = 'input window, operand 2, single buffered']
    #allocation8 [shape = 'u8[24576]{0}', space=vmem, size = 0x6000, scoped, tag = 'input window, operand 3, single buffered']
    #allocation9 [shape = 's32[1]{0}', space=sflag, size = 0x4, scoped, tag = 'scoped memory for tpu_custom_call.1']
    #allocation10 [shape = 'u8[24576]{0}', space=vmem, size = 0x6000, scoped, tag = 'input window, operand 4, single buffered']
    #allocation11 [shape = 'u8[8192]{0}', space=vmem, size = 0x2000, scoped, tag = 'output window, operand 0, single buffered']
    %11 = vsyncpa [#allocation3], 0
    %12 = vsyncpa [#allocation6], 0
    %13 = vsyncpa [#allocation9], 0
    %14 = vsyncpa [#allocation4], 0
    // Predicated region
    $region2: #{tpu_custom_call.1} parent=1 // pred_check
      _
    $region3: #{tpu_custom_call.1} parent=1 // pred_check_branch
      %16 = sbr.rel (0) target = $region5
    $region4: #{tpu_custom_call.1} parent=1 // pred_region
      %18 = vsyncadd [#allocation3], 0
      %s19 = sshll.u32 %s0, 4
      %s20 = int_to_ptr.hbm [resolvable:$true] %s19
      %s21 = sshll.u32 [#allocation2], 4
      %s22 = int_to_ptr.vmem [resolvable:$true] %s21
      %27 = dma.hbm_to_vmem [thread:$0]  %s20, 256, %s22, [#allocation3], 128, 128, 8
    $region5: #{tpu_custom_call.1} parent=1 // pred_fallthru
      _
    // Predicated region
    $region6: #{tpu_custom_call.1} parent=1 // pred_check
      _
    $region7: #{tpu_custom_call.1} parent=1 // pred_check_branch
      %29 = sbr.rel (0) target = $region9
    $region8: #{tpu_custom_call.1} parent=1 // pred_region
      %31 = vsyncadd [#allocation6], 0
      %s32 = sshll.u32 %s1, 4
      %s33 = int_to_ptr.hbm [resolvable:$true] %s32
      %s34 = sshll.u32 [#allocation5], 4
      %s35 = int_to_ptr.vmem [resolvable:$true] %s34
      %40 = dma.hbm_to_vmem [thread:$0]  %s33, 2304, %s35, [#allocation6], 384, 384, 24
    $region9: #{tpu_custom_call.1} parent=1 // pred_fallthru
      _
    // Predicated region
    $region10: #{tpu_custom_call.1} parent=1 // pred_check
      _
    $region11: #{tpu_custom_call.1} parent=1 // pred_check_branch
      %42 = sbr.rel (0) target = $region13
    $region12: #{tpu_custom_call.1} parent=1 // pred_region
      %44 = vsyncadd [#allocation6], 0
      %s46 = sshll.u32 %s2, 4
      %s47 = int_to_ptr.hbm [resolvable:$true] %s46
      %s48 = sshll.u32 [#allocation7], 4
      %s49 = int_to_ptr.vmem [resolvable:$true] %s48
      %51 = dma.hbm_to_vmem [thread:$0]  %s47, 48, %s49, [#allocation6]
    $region13: #{tpu_custom_call.1} parent=1 // pred_fallthru
      _
    // Predicated region
    $region14: #{tpu_custom_call.1} parent=1 // pred_check
      _
    $region15: #{tpu_custom_call.1} parent=1 // pred_check_branch
      %53 = sbr.rel (0) target = $region17
    $region16: #{tpu_custom_call.1} parent=1 // pred_region
      %55 = vsyncadd [#allocation9], 0
      %s56 = sshll.u32 %s3, 4
      %s57 = int_to_ptr.hbm [resolvable:$true] %s56
      %s58 = sshll.u32 [#allocation8], 4
      %s59 = int_to_ptr.vmem [resolvable:$true] %s58
      %64 = dma.hbm_to_vmem [thread:$0]  %s57, 768, %s59, [#allocation9], 128, 128, 8
    $region17: #{tpu_custom_call.1} parent=1 // pred_fallthru
      _
    // Predicated region
    $region18: #{tpu_custom_call.1} parent=1 // pred_check
      _
    $region19: #{tpu_custom_call.1} parent=1 // pred_check_branch
      %66 = sbr.rel (0) target = $region21
    $region20: #{tpu_custom_call.1} parent=1 // pred_region
      %68 = vsyncadd [#allocation9], 0
      %s69 = sshll.u32 %s4, 4
      %s70 = int_to_ptr.hbm [resolvable:$true] %s69
      %s71 = sshll.u32 [#allocation10], 4
      %s72 = int_to_ptr.vmem [resolvable:$true] %s71
      %77 = dma.hbm_to_vmem [thread:$0]  %s70, 768, %s72, [#allocation9], 128, 128, 8
    $region21: #{tpu_custom_call.1} parent=1 // pred_fallthru
      _
    // Predicated region
    $region22: #{tpu_custom_call.1} parent=1 // pred_check
      _
    $region23: #{tpu_custom_call.1} parent=1 // pred_check_branch
      %79 = sbr.rel (0) target = $region25
    $region24: #{tpu_custom_call.1} parent=1 // pred_region
      _
    $region25: #{tpu_custom_call.1} parent=1 // pred_fallthru
      _
    // Predicated region
    $region26: #{tpu_custom_call.1} parent=1 // pred_check
      _
    $region27: #{tpu_custom_call.1} parent=1 // pred_check_branch
      %81 = sbr.rel (0) target = $region29
    $region28: #{tpu_custom_call.1} parent=1 // pred_region
      %83 = dma.done [#allocation3], 256
    $region29: #{tpu_custom_call.1} parent=1 // pred_fallthru
      _
    // Predicated region
    $region30: #{tpu_custom_call.1} parent=1 // pred_check
      _
    $region31: #{tpu_custom_call.1} parent=1 // pred_check_branch
      %85 = sbr.rel (0) target = $region33
    $region32: #{tpu_custom_call.1} parent=1 // pred_region
      %87 = dma.done [#allocation6], 2304
    $region33: #{tpu_custom_call.1} parent=1 // pred_fallthru
      _
    // Predicated region
    $region34: #{tpu_custom_call.1} parent=1 // pred_check
      _
    $region35: #{tpu_custom_call.1} parent=1 // pred_check_branch
      %89 = sbr.rel (0) target = $region37
    $region36: #{tpu_custom_call.1} parent=1 // pred_region
      %91 = dma.done [#allocation6], 48
    $region37: #{tpu_custom_call.1} parent=1 // pred_fallthru
      _
    // Predicated region
    $region38: #{tpu_custom_call.1} parent=1 // pred_check
      _
    $region39: #{tpu_custom_call.1} parent=1 // pred_check_branch
      %93 = sbr.rel (0) target = $region41
    $region40: #{tpu_custom_call.1} parent=1 // pred_region
      %95 = dma.done [#allocation9], 768
    $region41: #{tpu_custom_call.1} parent=1 // pred_fallthru
      _
    // Predicated region
    $region42: #{tpu_custom_call.1} parent=1 // pred_check
      _
    $region43: #{tpu_custom_call.1} parent=1 // pred_check_branch
      %97 = sbr.rel (0) target = $region45
    $region44: #{tpu_custom_call.1} parent=1 // pred_region
      %99 = dma.done [#allocation9], 768
    $region45: #{tpu_custom_call.1} parent=1 // pred_fallthru
      _
    %v100 = vld [vmem:[#allocation2] sm:$0xff]
    %v101 = vld [vmem:[#allocation2 + $0x8] sm:$0xff]
    %v102 = vld [vmem:[#allocation5] sm:$0xff]
    %v103 = vld [vmem:[#allocation5 + $0x8] sm:$0xff]
    %v104 = vld [vmem:[#allocation5 + $0x10] sm:$0xff]
    %v105 = vld [vmem:[#allocation5 + $0x18] sm:$0xff]
    %v106 = vld [vmem:[#allocation5 + $0x20] sm:$0xff]
    %v107 = vld [vmem:[#allocation5 + $0x28] sm:$0xff]
    %v108 = vld [vmem:[#allocation5 + $0x30] sm:$0xff]
    %v109 = vld [vmem:[#allocation5 + $0x38] sm:$0xff]
    %v110 = vld [vmem:[#allocation5 + $0x40] sm:$0xff]
    %v111 = vld [vmem:[#allocation5 + $0x48] sm:$0xff]
    %v112 = vld [vmem:[#allocation5 + $0x50] sm:$0xff]
    %v113 = vld [vmem:[#allocation5 + $0x58] sm:$0xff]
    %v114 = vld [vmem:[#allocation5 + $0x60] sm:$0xff]
    %v115 = vld [vmem:[#allocation5 + $0x68] sm:$0xff]
    %v116 = vld [vmem:[#allocation5 + $0x70] sm:$0xff]
    %v117 = vld [vmem:[#allocation5 + $0x78] sm:$0xff]
    %v118 = vld [vmem:[#allocation5 + $0x80] sm:$0xff]
    %v119 = vld [vmem:[#allocation5 + $0x88] sm:$0xff]
    %v120 = vld [vmem:[#allocation7] sm:$0x7]
    %v122 = vperm.slane %v120, 0
    %v123 = vperm.slane %v120, 1
    %v124 = vperm.slane %v120, 2
    %vm128 = vcmask 392192
    %v130 = vsel %vm128, %v100, 0
    %v133 = vsel %vm128, %v101, 0
    %135 = vmatpush.msra.mxu0 0.0
    %136 = vmatpush.msra.mxu0 0.0
    %137 = vmatpush.msra.mxu0 0.0
    %138 = vmatpush.msra.mxu0 0.0
    %139 = vmatpush.msra.mxu0 0.0
    %140 = vmatpush.msra.mxu0 0.0
    %141 = vmatpush.msra.mxu0 0.0
    %142 = vmatpush.msra.mxu0 0.0
    %143 = vmatpush.msra.mxu0 0.0
    %144 = vmatpush.msra.mxu0 0.0
    %145 = vmatpush.msra.mxu0 %v117
    %146 = vmatpush.msra.mxu0 %v114
    %147 = vmatpush.msra.mxu0 %v111
    %148 = vmatpush.msra.mxu0 %v108
    %149 = vmatpush.msra.mxu0 %v105
    %150 = vmatpush.msra.mxu0 %v102
    %151 = vmatmul.f32.gmra.mxu0 %v130
    %v152 = vpop.f32.mrf.mxu0
    %v153 = vadd.f32 %v122, %v152
    %154 = vmatmul.f32.gmra.mxu0 %v133
    %v155 = vpop.f32.mrf.mxu0
    %v156 = vadd.f32 %v122, %v155
    %157 = vdwg.mxu0
    %158 = vmatpush.msra.mxu0 0.0
    %159 = vmatpush.msra.mxu0 0.0
    %160 = vmatpush.msra.mxu0 0.0
    %161 = vmatpush.msra.mxu0 0.0
    %162 = vmatpush.msra.mxu0 0.0
    %163 = vmatpush.msra.mxu0 0.0
    %164 = vmatpush.msra.mxu0 0.0
    %165 = vmatpush.msra.mxu0 0.0
    %166 = vmatpush.msra.mxu0 0.0
    %167 = vmatpush.msra.mxu0 0.0
    %168 = vmatpush.msra.mxu0 %v118
    %169 = vmatpush.msra.mxu0 %v115
    %170 = vmatpush.msra.mxu0 %v112
    %171 = vmatpush.msra.mxu0 %v109
    %172 = vmatpush.msra.mxu0 %v106
    %173 = vmatpush.msra.mxu0 %v103
    %174 = vmatmul.f32.gmra.mxu0 %v130
    %v175 = vpop.f32.mrf.mxu0
    %v176 = vadd.f32 %v123, %v175
    %177 = vmatmul.f32.gmra.mxu0 %v133
    %v178 = vpop.f32.mrf.mxu0
    %v179 = vadd.f32 %v123, %v178
    %180 = vdwg.mxu0
    %181 = vmatpush.msra.mxu0 0.0
    %182 = vmatpush.msra.mxu0 0.0
    %183 = vmatpush.msra.mxu0 0.0
    %184 = vmatpush.msra.mxu0 0.0
    %185 = vmatpush.msra.mxu0 0.0
    %186 = vmatpush.msra.mxu0 0.0
    %187 = vmatpush.msra.mxu0 0.0
    %188 = vmatpush.msra.mxu0 0.0
    %189 = vmatpush.msra.mxu0 0.0
    %190 = vmatpush.msra.mxu0 0.0
    %191 = vmatpush.msra.mxu0 %v119
    %192 = vmatpush.msra.mxu0 %v116
    %193 = vmatpush.msra.mxu0 %v113
    %194 = vmatpush.msra.mxu0 %v110
    %195 = vmatpush.msra.mxu0 %v107
    %196 = vmatpush.msra.mxu0 %v104
    %197 = vmatmul.f32.gmra.mxu0 %v130
    %v198 = vpop.f32.mrf.mxu0
    %v199 = vadd.f32 %v124, %v198
    %200 = vmatmul.f32.gmra.mxu0 %v133
    %v201 = vpop.f32.mrf.mxu0
    %v202 = vadd.f32 %v124, %v201
    %203 = vdwg.mxu0
    %v206 = vrot.slane %v153, 1
    %v207 = vrot.slane %v153, 2
    %v208 = vrot.slane %v153, 3
    %v209 = vrot.slane %v153, 4
    %v210 = vrot.slane %v153, 5
    %v211 = vrot.slane %v153, 6
    %v212 = vrot.slane %v153, 7
    %v213 = vrot.slane %v156, 1
    %v214 = vrot.slane %v156, 2
    %v215 = vrot.slane %v156, 3
    %v216 = vrot.slane %v156, 4
    %v217 = vrot.slane %v156, 5
    %v218 = vrot.slane %v156, 6
    %v219 = vrot.slane %v156, 7
    %v220 = vperm.slane %v153, 0
    %v221 = vperm.slane %v206, 0
    %v222 = vperm.slane %v207, 0
    %v223 = vperm.slane %v208, 0
    %v224 = vperm.slane %v209, 0
    %v225 = vperm.slane %v210, 0
    %v226 = vperm.slane %v211, 0
    %v227 = vperm.slane %v212, 0
    %v228 = vperm.slane %v156, 0
    %v229 = vperm.slane %v213, 0
    %v230 = vperm.slane %v214, 0
    %v231 = vperm.slane %v215, 0
    %v232 = vperm.slane %v216, 0
    %v233 = vperm.slane %v217, 0
    %v234 = vperm.slane %v218, 0
    %v235 = vperm.slane %v219, 0
    %v252 = vmul.f32 %v220, %v176
    %v253 = vmul.f32 %v221, %v176
    %v254 = vmul.f32 %v222, %v176
    %v255 = vmul.f32 %v223, %v176
    %v256 = vmul.f32 %v224, %v176
    %v257 = vmul.f32 %v225, %v176
    %v258 = vmul.f32 %v226, %v176
    %v259 = vmul.f32 %v227, %v176
    %v260 = vmul.f32 %v228, %v179
    %v261 = vmul.f32 %v229, %v179
    %v262 = vmul.f32 %v230, %v179
    %v263 = vmul.f32 %v231, %v179
    %v264 = vmul.f32 %v232, %v179
    %v265 = vmul.f32 %v233, %v179
    %v266 = vmul.f32 %v234, %v179
    %v267 = vmul.f32 %v235, %v179
    %v268 = vld [vmem:[#allocation8] sm:$0xff]
    %v269 = vld [vmem:[#allocation8 + $0x8] sm:$0xff]
    %v270 = vld [vmem:[#allocation8 + $0x10] sm:$0xff]
    %v271 = vld [vmem:[#allocation8 + $0x18] sm:$0xff]
    %v272 = vld [vmem:[#allocation8 + $0x20] sm:$0xff]
    %v273 = vld [vmem:[#allocation8 + $0x28] sm:$0xff]
    %v275 = vsel %vm128, %v252, 0
    %v278 = vsel %vm128, %v253, 0
    %v281 = vsel %vm128, %v254, 0
    %v284 = vsel %vm128, %v255, 0
    %v287 = vsel %vm128, %v256, 0
    %v290 = vsel %vm128, %v257, 0
    %v293 = vsel %vm128, %v258, 0
    %v296 = vsel %vm128, %v259, 0
    %v299 = vsel %vm128, %v260, 0
    %v302 = vsel %vm128, %v261, 0
    %v305 = vsel %vm128, %v262, 0
    %v308 = vsel %vm128, %v263, 0
    %v311 = vsel %vm128, %v264, 0
    %v314 = vsel %vm128, %v265, 0
    %v317 = vsel %vm128, %v266, 0
    %v320 = vsel %vm128, %v267, 0
    %322 = vmatpush.msra.mxu0 0.0
    %323 = vmatpush.msra.mxu0 0.0
    %324 = vmatpush.msra.mxu0 0.0
    %325 = vmatpush.msra.mxu0 0.0
    %326 = vmatpush.msra.mxu0 0.0
    %327 = vmatpush.msra.mxu0 0.0
    %328 = vmatpush.msra.mxu0 0.0
    %329 = vmatpush.msra.mxu0 0.0
    %330 = vmatpush.msra.mxu0 0.0
    %331 = vmatpush.msra.mxu0 0.0
    %332 = vmatpush.msra.mxu0 %v273
    %333 = vmatpush.msra.mxu0 %v272
    %334 = vmatpush.msra.mxu0 %v271
    %335 = vmatpush.msra.mxu0 %v270
    %336 = vmatpush.msra.mxu0 %v269
    %337 = vmatpush.msra.mxu0 %v268
    %338 = vmatmul.f32.gmra.mxu0 %v275
    %v339 = vpop.f32.mrf.mxu0
    %v340 = vadd.f32 0.0, %v339
    %341 = vmatmul.f32.gmra.mxu0 %v278
    %v342 = vpop.f32.mrf.mxu0
    %v343 = vadd.f32 0.0, %v342
    %344 = vmatmul.f32.gmra.mxu0 %v281
    %v345 = vpop.f32.mrf.mxu0
    %v346 = vadd.f32 0.0, %v345
    %347 = vmatmul.f32.gmra.mxu0 %v284
    %v348 = vpop.f32.mrf.mxu0
    %v349 = vadd.f32 0.0, %v348
    %350 = vmatmul.f32.gmra.mxu0 %v287
    %v351 = vpop.f32.mrf.mxu0
    %v352 = vadd.f32 0.0, %v351
    %353 = vmatmul.f32.gmra.mxu0 %v290
    %v354 = vpop.f32.mrf.mxu0
    %v355 = vadd.f32 0.0, %v354
    %356 = vmatmul.f32.gmra.mxu0 %v293
    %v357 = vpop.f32.mrf.mxu0
    %v358 = vadd.f32 0.0, %v357
    %359 = vmatmul.f32.gmra.mxu0 %v296
    %v360 = vpop.f32.mrf.mxu0
    %v361 = vadd.f32 0.0, %v360
    %362 = vmatmul.f32.gmra.mxu0 %v299
    %v363 = vpop.f32.mrf.mxu0
    %v364 = vadd.f32 0.0, %v363
    %365 = vmatmul.f32.gmra.mxu0 %v302
    %v366 = vpop.f32.mrf.mxu0
    %v367 = vadd.f32 0.0, %v366
    %368 = vmatmul.f32.gmra.mxu0 %v305
    %v369 = vpop.f32.mrf.mxu0
    %v370 = vadd.f32 0.0, %v369
    %371 = vmatmul.f32.gmra.mxu0 %v308
    %v372 = vpop.f32.mrf.mxu0
    %v373 = vadd.f32 0.0, %v372
    %374 = vmatmul.f32.gmra.mxu0 %v311
    %v375 = vpop.f32.mrf.mxu0
    %v376 = vadd.f32 0.0, %v375
    %377 = vmatmul.f32.gmra.mxu0 %v314
    %v378 = vpop.f32.mrf.mxu0
    %v379 = vadd.f32 0.0, %v378
    %380 = vmatmul.f32.gmra.mxu0 %v317
    %v381 = vpop.f32.mrf.mxu0
    %v382 = vadd.f32 0.0, %v381
    %383 = vmatmul.f32.gmra.mxu0 %v320
    %v384 = vpop.f32.mrf.mxu0
    %v385 = vadd.f32 0.0, %v384
    %386 = vdwg.mxu0
    %v387 = vsel %vm128, %v340, -inf
    %v388 = vrot.slane %v387, 4
    %v389 = vmax.f32 %v387, %v388
    %v390 = vrot.slane %v389, 2
    %v391 = vmax.f32 %v389, %v390
    %v392 = vrot.slane %v391, 1
    %v393 = vmax.f32 %v391, %v392
    %v394 = vsel %vm128, %v343, -inf
    %v395 = vrot.slane %v394, 4
    %v396 = vmax.f32 %v394, %v395
    %v397 = vrot.slane %v396, 2
    %v398 = vmax.f32 %v396, %v397
    %v399 = vrot.slane %v398, 1
    %v400 = vmax.f32 %v398, %v399
    %v401 = vsel %vm128, %v346, -inf
    %v402 = vrot.slane %v401, 4
    %v403 = vmax.f32 %v401, %v402
    %v404 = vrot.slane %v403, 2
    %v405 = vmax.f32 %v403, %v404
    %v406 = vrot.slane %v405, 1
    %v407 = vmax.f32 %v405, %v406
    %v408 = vsel %vm128, %v349, -inf
    %v409 = vrot.slane %v408, 4
    %v410 = vmax.f32 %v408, %v409
    %v411 = vrot.slane %v410, 2
    %v412 = vmax.f32 %v410, %v411
    %v413 = vrot.slane %v412, 1
    %v414 = vmax.f32 %v412, %v413
    %v415 = vsel %vm128, %v352, -inf
    %v416 = vrot.slane %v415, 4
    %v417 = vmax.f32 %v415, %v416
    %v418 = vrot.slane %v417, 2
    %v419 = vmax.f32 %v417, %v418
    %v420 = vrot.slane %v419, 1
    %v421 = vmax.f32 %v419, %v420
    %v422 = vsel %vm128, %v355, -inf
    %v423 = vrot.slane %v422, 4
    %v424 = vmax.f32 %v422, %v423
    %v425 = vrot.slane %v424, 2
    %v426 = vmax.f32 %v424, %v425
    %v427 = vrot.slane %v426, 1
    %v428 = vmax.f32 %v426, %v427
    %v429 = vsel %vm128, %v358, -inf
    %v430 = vrot.slane %v429, 4
    %v431 = vmax.f32 %v429, %v430
    %v432 = vrot.slane %v431, 2
    %v433 = vmax.f32 %v431, %v432
    %v434 = vrot.slane %v433, 1
    %v435 = vmax.f32 %v433, %v434
    %v436 = vsel %vm128, %v361, -inf
    %v437 = vrot.slane %v436, 4
    %v438 = vmax.f32 %v436, %v437
    %v439 = vrot.slane %v438, 2
    %v440 = vmax.f32 %v438, %v439
    %v441 = vrot.slane %v440, 1
    %v442 = vmax.f32 %v440, %v441
    %v443 = vsel %vm128, %v364, -inf
    %v444 = vrot.slane %v443, 4
    %v445 = vmax.f32 %v443, %v444
    %v446 = vrot.slane %v445, 2
    %v447 = vmax.f32 %v445, %v446
    %v448 = vrot.slane %v447, 1
    %v449 = vmax.f32 %v447, %v448
    %v450 = vsel %vm128, %v367, -inf
    %v451 = vrot.slane %v450, 4
    %v452 = vmax.f32 %v450, %v451
    %v453 = vrot.slane %v452, 2
    %v454 = vmax.f32 %v452, %v453
    %v455 = vrot.slane %v454, 1
    %v456 = vmax.f32 %v454, %v455
    %v457 = vsel %vm128, %v370, -inf
    %v458 = vrot.slane %v457, 4
    %v459 = vmax.f32 %v457, %v458
    %v460 = vrot.slane %v459, 2
    %v461 = vmax.f32 %v459, %v460
    %v462 = vrot.slane %v461, 1
    %v463 = vmax.f32 %v461, %v462
    %v464 = vsel %vm128, %v373, -inf
    %v465 = vrot.slane %v464, 4
    %v466 = vmax.f32 %v464, %v465
    %v467 = vrot.slane %v466, 2
    %v468 = vmax.f32 %v466, %v467
    %v469 = vrot.slane %v468, 1
    %v470 = vmax.f32 %v468, %v469
    %v471 = vsel %vm128, %v376, -inf
    %v472 = vrot.slane %v471, 4
    %v473 = vmax.f32 %v471, %v472
    %v474 = vrot.slane %v473, 2
    %v475 = vmax.f32 %v473, %v474
    %v476 = vrot.slane %v475, 1
    %v477 = vmax.f32 %v475, %v476
    %v478 = vsel %vm128, %v379, -inf
    %v479 = vrot.slane %v478, 4
    %v480 = vmax.f32 %v478, %v479
    %v481 = vrot.slane %v480, 2
    %v482 = vmax.f32 %v480, %v481
    %v483 = vrot.slane %v482, 1
    %v484 = vmax.f32 %v482, %v483
    %v485 = vsel %vm128, %v382, -inf
    %v486 = vrot.slane %v485, 4
    %v487 = vmax.f32 %v485, %v486
    %v488 = vrot.slane %v487, 2
    %v489 = vmax.f32 %v487, %v488
    %v490 = vrot.slane %v489, 1
    %v491 = vmax.f32 %v489, %v490
    %v492 = vsel %vm128, %v385, -inf
    %v493 = vrot.slane %v492, 4
    %v494 = vmax.f32 %v492, %v493
    %v495 = vrot.slane %v494, 2
    %v496 = vmax.f32 %v494, %v495
    %v497 = vrot.slane %v496, 1
    %v498 = vmax.f32 %v496, %v497
    %v499 = vsub.f32 %v340, %v393
    %v500 = vsub.f32 %v343, %v400
    %v501 = vsub.f32 %v346, %v407
    %v502 = vsub.f32 %v349, %v414
    %v503 = vsub.f32 %v352, %v421
    %v504 = vsub.f32 %v355, %v428
    %v505 = vsub.f32 %v358, %v435
    %v506 = vsub.f32 %v361, %v442
    %v507 = vsub.f32 %v364, %v449
    %v508 = vsub.f32 %v367, %v456
    %v509 = vsub.f32 %v370, %v463
    %v510 = vsub.f32 %v373, %v470
    %v511 = vsub.f32 %v376, %v477
    %v512 = vsub.f32 %v379, %v484
    %v513 = vsub.f32 %v382, %v491
    %v514 = vsub.f32 %v385, %v498
    %v515 = vmul.f32 %v499, 1.442695
    %v516 = vpow.pop %v515
    %v517 = vmul.f32 %v500, 1.442695
    %v518 = vpow.pop %v517
    %v519 = vmul.f32 %v501, 1.442695
    %v520 = vpow.pop %v519
    %v521 = vmul.f32 %v502, 1.442695
    %v522 = vpow.pop %v521
    %v523 = vmul.f32 %v503, 1.442695
    %v524 = vpow.pop %v523
    %v525 = vmul.f32 %v504, 1.442695
    %v526 = vpow.pop %v525
    %v527 = vmul.f32 %v505, 1.442695
    %v528 = vpow.pop %v527
    %v529 = vmul.f32 %v506, 1.442695
    %v530 = vpow.pop %v529
    %v531 = vmul.f32 %v507, 1.442695
    %v532 = vpow.pop %v531
    %v533 = vmul.f32 %v508, 1.442695
    %v534 = vpow.pop %v533
    %v535 = vmul.f32 %v509, 1.442695
    %v536 = vpow.pop %v535
    %v537 = vmul.f32 %v510, 1.442695
    %v538 = vpow.pop %v537
    %v539 = vmul.f32 %v511, 1.442695
    %v540 = vpow.pop %v539
    %v541 = vmul.f32 %v512, 1.442695
    %v542 = vpow.pop %v541
    %v543 = vmul.f32 %v513, 1.442695
    %v544 = vpow.pop %v543
    %v545 = vmul.f32 %v514, 1.442695
    %v546 = vpow.pop %v545
    %v547 = vsel %vm128, %v516, 0.0
    %v548 = vrot.slane %v547, 4
    %v549 = vadd.f32 %v547, %v548
    %v550 = vrot.slane %v549, 2
    %v551 = vadd.f32 %v549, %v550
    %v552 = vrot.slane %v551, 1
    %v553 = vadd.f32 %v551, %v552
    %v554 = vsel %vm128, %v518, 0.0
    %v555 = vrot.slane %v554, 4
    %v556 = vadd.f32 %v554, %v555
    %v557 = vrot.slane %v556, 2
    %v558 = vadd.f32 %v556, %v557
    %v559 = vrot.slane %v558, 1
    %v560 = vadd.f32 %v558, %v559
    %v561 = vsel %vm128, %v520, 0.0
    %v562 = vrot.slane %v561, 4
    %v563 = vadd.f32 %v561, %v562
    %v564 = vrot.slane %v563, 2
    %v565 = vadd.f32 %v563, %v564
    %v566 = vrot.slane %v565, 1
    %v567 = vadd.f32 %v565, %v566
    %v568 = vsel %vm128, %v522, 0.0
    %v569 = vrot.slane %v568, 4
    %v570 = vadd.f32 %v568, %v569
    %v571 = vrot.slane %v570, 2
    %v572 = vadd.f32 %v570, %v571
    %v573 = vrot.slane %v572, 1
    %v574 = vadd.f32 %v572, %v573
    %v575 = vsel %vm128, %v524, 0.0
    %v576 = vrot.slane %v575, 4
    %v577 = vadd.f32 %v575, %v576
    %v578 = vrot.slane %v577, 2
    %v579 = vadd.f32 %v577, %v578
    %v580 = vrot.slane %v579, 1
    %v581 = vadd.f32 %v579, %v580
    %v582 = vsel %vm128, %v526, 0.0
    %v583 = vrot.slane %v582, 4
    %v584 = vadd.f32 %v582, %v583
    %v585 = vrot.slane %v584, 2
    %v586 = vadd.f32 %v584, %v585
    %v587 = vrot.slane %v586, 1
    %v588 = vadd.f32 %v586, %v587
    %v589 = vsel %vm128, %v528, 0.0
    %v590 = vrot.slane %v589, 4
    %v591 = vadd.f32 %v589, %v590
    %v592 = vrot.slane %v591, 2
    %v593 = vadd.f32 %v591, %v592
    %v594 = vrot.slane %v593, 1
    %v595 = vadd.f32 %v593, %v594
    %v596 = vsel %vm128, %v530, 0.0
    %v597 = vrot.slane %v596, 4
    %v598 = vadd.f32 %v596, %v597
    %v599 = vrot.slane %v598, 2
    %v600 = vadd.f32 %v598, %v599
    %v601 = vrot.slane %v600, 1
    %v602 = vadd.f32 %v600, %v601
    %v603 = vsel %vm128, %v532, 0.0
    %v604 = vrot.slane %v603, 4
    %v605 = vadd.f32 %v603, %v604
    %v606 = vrot.slane %v605, 2
    %v607 = vadd.f32 %v605, %v606
    %v608 = vrot.slane %v607, 1
    %v609 = vadd.f32 %v607, %v608
    %v610 = vsel %vm128, %v534, 0.0
    %v611 = vrot.slane %v610, 4
    %v612 = vadd.f32 %v610, %v611
    %v613 = vrot.slane %v612, 2
    %v614 = vadd.f32 %v612, %v613
    %v615 = vrot.slane %v614, 1
    %v616 = vadd.f32 %v614, %v615
    %v617 = vsel %vm128, %v536, 0.0
    %v618 = vrot.slane %v617, 4
    %v619 = vadd.f32 %v617, %v618
    %v620 = vrot.slane %v619, 2
    %v621 = vadd.f32 %v619, %v620
    %v622 = vrot.slane %v621, 1
    %v623 = vadd.f32 %v621, %v622
    %v624 = vsel %vm128, %v538, 0.0
    %v625 = vrot.slane %v624, 4
    %v626 = vadd.f32 %v624, %v625
    %v627 = vrot.slane %v626, 2
    %v628 = vadd.f32 %v626, %v627
    %v629 = vrot.slane %v628, 1
    %v630 = vadd.f32 %v628, %v629
    %v631 = vsel %vm128, %v540, 0.0
    %v632 = vrot.slane %v631, 4
    %v633 = vadd.f32 %v631, %v632
    %v634 = vrot.slane %v633, 2
    %v635 = vadd.f32 %v633, %v634
    %v636 = vrot.slane %v635, 1
    %v637 = vadd.f32 %v635, %v636
    %v638 = vsel %vm128, %v542, 0.0
    %v639 = vrot.slane %v638, 4
    %v640 = vadd.f32 %v638, %v639
    %v641 = vrot.slane %v640, 2
    %v642 = vadd.f32 %v640, %v641
    %v643 = vrot.slane %v642, 1
    %v644 = vadd.f32 %v642, %v643
    %v645 = vsel %vm128, %v544, 0.0
    %v646 = vrot.slane %v645, 4
    %v647 = vadd.f32 %v645, %v646
    %v648 = vrot.slane %v647, 2
    %v649 = vadd.f32 %v647, %v648
    %v650 = vrot.slane %v649, 1
    %v651 = vadd.f32 %v649, %v650
    %v652 = vsel %vm128, %v546, 0.0
    %v653 = vrot.slane %v652, 4
    %v654 = vadd.f32 %v652, %v653
    %v655 = vrot.slane %v654, 2
    %v656 = vadd.f32 %v654, %v655
    %v657 = vrot.slane %v656, 1
    %v658 = vadd.f32 %v656, %v657
    %v659 = vrcp.pop %v553
    %v660 = vmul.f32 %v553, %v659
    %v661 = vsub.f32 1.0, %v660
    %v662 = vmul.f32 %v659, %v661
    %v663 = vadd.f32 %v659, %v662
    %vm664 = vweird.f32 %v553
    %vm665 = vweird.f32 %v659
    %vm666 = vmor %vm664, %vm665
    %v667 = vsel %vm666, %v659, %v663
    %v668 = vand.u32 2147483647, %v553
    %vm669 = vcmp.eq.f32.partialorder %v668, 8.507059e+37
    %v670 = vand.u32 %v553, 2147483648
    %v671 = vor.u32 1.1754944e-38, %v670
    %v672 = vsel %vm669, %v671, %v667
    %v673 = vmul.f32 %v516, %v672
    %v674 = vrcp.pop %v560
    %v675 = vmul.f32 %v560, %v674
    %v676 = vsub.f32 1.0, %v675
    %v677 = vmul.f32 %v674, %v676
    %v678 = vadd.f32 %v674, %v677
    %vm679 = vweird.f32 %v560
    %vm680 = vweird.f32 %v674
    %vm681 = vmor %vm679, %vm680
    %v682 = vsel %vm681, %v674, %v678
    %v683 = vand.u32 2147483647, %v560
    %vm684 = vcmp.eq.f32.partialorder %v683, 8.507059e+37
    %v685 = vand.u32 %v560, 2147483648
    %v686 = vor.u32 1.1754944e-38, %v685
    %v687 = vsel %vm684, %v686, %v682
    %v688 = vmul.f32 %v518, %v687
    %v689 = vrcp.pop %v567
    %v690 = vmul.f32 %v567, %v689
    %v691 = vsub.f32 1.0, %v690
    %v692 = vmul.f32 %v689, %v691
    %v693 = vadd.f32 %v689, %v692
    %vm694 = vweird.f32 %v567
    %vm695 = vweird.f32 %v689
    %vm696 = vmor %vm694, %vm695
    %v697 = vsel %vm696, %v689, %v693
    %v698 = vand.u32 2147483647, %v567
    %vm699 = vcmp.eq.f32.partialorder %v698, 8.507059e+37
    %v700 = vand.u32 %v567, 2147483648
    %v701 = vor.u32 1.1754944e-38, %v700
    %v702 = vsel %vm699, %v701, %v697
    %v703 = vmul.f32 %v520, %v702
    %v704 = vrcp.pop %v574
    %v705 = vmul.f32 %v574, %v704
    %v706 = vsub.f32 1.0, %v705
    %v707 = vmul.f32 %v704, %v706
    %v708 = vadd.f32 %v704, %v707
    %vm709 = vweird.f32 %v574
    %vm710 = vweird.f32 %v704
    %vm711 = vmor %vm709, %vm710
    %v712 = vsel %vm711, %v704, %v708
    %v713 = vand.u32 2147483647, %v574
    %vm714 = vcmp.eq.f32.partialorder %v713, 8.507059e+37
    %v715 = vand.u32 %v574, 2147483648
    %v716 = vor.u32 1.1754944e-38, %v715
    %v717 = vsel %vm714, %v716, %v712
    %v718 = vmul.f32 %v522, %v717
    %v719 = vrcp.pop %v581
    %v720 = vmul.f32 %v581, %v719
    %v721 = vsub.f32 1.0, %v720
    %v722 = vmul.f32 %v719, %v721
    %v723 = vadd.f32 %v719, %v722
    %vm724 = vweird.f32 %v581
    %vm725 = vweird.f32 %v719
    %vm726 = vmor %vm724, %vm725
    %v727 = vsel %vm726, %v719, %v723
    %v728 = vand.u32 2147483647, %v581
    %vm729 = vcmp.eq.f32.partialorder %v728, 8.507059e+37
    %v730 = vand.u32 %v581, 2147483648
    %v731 = vor.u32 1.1754944e-38, %v730
    %v732 = vsel %vm729, %v731, %v727
    %v733 = vmul.f32 %v524, %v732
    %v734 = vrcp.pop %v588
    %v735 = vmul.f32 %v588, %v734
    %v736 = vsub.f32 1.0, %v735
    %v737 = vmul.f32 %v734, %v736
    %v738 = vadd.f32 %v734, %v737
    %vm739 = vweird.f32 %v588
    %vm740 = vweird.f32 %v734
    %vm741 = vmor %vm739, %vm740
    %v742 = vsel %vm741, %v734, %v738
    %v743 = vand.u32 2147483647, %v588
    %vm744 = vcmp.eq.f32.partialorder %v743, 8.507059e+37
    %v745 = vand.u32 %v588, 2147483648
    %v746 = vor.u32 1.1754944e-38, %v745
    %v747 = vsel %vm744, %v746, %v742
    %v748 = vmul.f32 %v526, %v747
    %v749 = vrcp.pop %v595
    %v750 = vmul.f32 %v595, %v749
    %v751 = vsub.f32 1.0, %v750
    %v752 = vmul.f32 %v749, %v751
    %v753 = vadd.f32 %v749, %v752
    %vm754 = vweird.f32 %v595
    %vm755 = vweird.f32 %v749
    %vm756 = vmor %vm754, %vm755
    %v757 = vsel %vm756, %v749, %v753
    %v758 = vand.u32 2147483647, %v595
    %vm759 = vcmp.eq.f32.partialorder %v758, 8.507059e+37
    %v760 = vand.u32 %v595, 2147483648
    %v761 = vor.u32 1.1754944e-38, %v760
    %v762 = vsel %vm759, %v761, %v757
    %v763 = vmul.f32 %v528, %v762
    %v764 = vrcp.pop %v602
    %v765 = vmul.f32 %v602, %v764
    %v766 = vsub.f32 1.0, %v765
    %v767 = vmul.f32 %v764, %v766
    %v768 = vadd.f32 %v764, %v767
    %vm769 = vweird.f32 %v602
    %vm770 = vweird.f32 %v764
    %vm771 = vmor %vm769, %vm770
    %v772 = vsel %vm771, %v764, %v768
    %v773 = vand.u32 2147483647, %v602
    %vm774 = vcmp.eq.f32.partialorder %v773, 8.507059e+37
    %v775 = vand.u32 %v602, 2147483648
    %v776 = vor.u32 1.1754944e-38, %v775
    %v777 = vsel %vm774, %v776, %v772
    %v778 = vmul.f32 %v530, %v777
    %v779 = vrcp.pop %v609
    %v780 = vmul.f32 %v609, %v779
    %v781 = vsub.f32 1.0, %v780
    %v782 = vmul.f32 %v779, %v781
    %v783 = vadd.f32 %v779, %v782
    %vm784 = vweird.f32 %v609
    %vm785 = vweird.f32 %v779
    %vm786 = vmor %vm784, %vm785
    %v787 = vsel %vm786, %v779, %v783
    %v788 = vand.u32 2147483647, %v609
    %vm789 = vcmp.eq.f32.partialorder %v788, 8.507059e+37
    %v790 = vand.u32 %v609, 2147483648
    %v791 = vor.u32 1.1754944e-38, %v790
    %v792 = vsel %vm789, %v791, %v787
    %v793 = vmul.f32 %v532, %v792
    %v794 = vrcp.pop %v616
    %v795 = vmul.f32 %v616, %v794
    %v796 = vsub.f32 1.0, %v795
    %v797 = vmul.f32 %v794, %v796
    %v798 = vadd.f32 %v794, %v797
    %vm799 = vweird.f32 %v616
    %vm800 = vweird.f32 %v794
    %vm801 = vmor %vm799, %vm800
    %v802 = vsel %vm801, %v794, %v798
    %v803 = vand.u32 2147483647, %v616
    %vm804 = vcmp.eq.f32.partialorder %v803, 8.507059e+37
    %v805 = vand.u32 %v616, 2147483648
    %v806 = vor.u32 1.1754944e-38, %v805
    %v807 = vsel %vm804, %v806, %v802
    %v808 = vmul.f32 %v534, %v807
    %v809 = vrcp.pop %v623
    %v810 = vmul.f32 %v623, %v809
    %v811 = vsub.f32 1.0, %v810
    %v812 = vmul.f32 %v809, %v811
    %v813 = vadd.f32 %v809, %v812
    %vm814 = vweird.f32 %v623
    %vm815 = vweird.f32 %v809
    %vm816 = vmor %vm814, %vm815
    %v817 = vsel %vm816, %v809, %v813
    %v818 = vand.u32 2147483647, %v623
    %vm819 = vcmp.eq.f32.partialorder %v818, 8.507059e+37
    %v820 = vand.u32 %v623, 2147483648
    %v821 = vor.u32 1.1754944e-38, %v820
    %v822 = vsel %vm819, %v821, %v817
    %v823 = vmul.f32 %v536, %v822
    %v824 = vrcp.pop %v630
    %v825 = vmul.f32 %v630, %v824
    %v826 = vsub.f32 1.0, %v825
    %v827 = vmul.f32 %v824, %v826
    %v828 = vadd.f32 %v824, %v827
    %vm829 = vweird.f32 %v630
    %vm830 = vweird.f32 %v824
    %vm831 = vmor %vm829, %vm830
    %v832 = vsel %vm831, %v824, %v828
    %v833 = vand.u32 2147483647, %v630
    %vm834 = vcmp.eq.f32.partialorder %v833, 8.507059e+37
    %v835 = vand.u32 %v630, 2147483648
    %v836 = vor.u32 1.1754944e-38, %v835
    %v837 = vsel %vm834, %v836, %v832
    %v838 = vmul.f32 %v538, %v837
    %v839 = vrcp.pop %v637
    %v840 = vmul.f32 %v637, %v839
    %v841 = vsub.f32 1.0, %v840
    %v842 = vmul.f32 %v839, %v841
    %v843 = vadd.f32 %v839, %v842
    %vm844 = vweird.f32 %v637
    %vm845 = vweird.f32 %v839
    %vm846 = vmor %vm844, %vm845
    %v847 = vsel %vm846, %v839, %v843
    %v848 = vand.u32 2147483647, %v637
    %vm849 = vcmp.eq.f32.partialorder %v848, 8.507059e+37
    %v850 = vand.u32 %v637, 2147483648
    %v851 = vor.u32 1.1754944e-38, %v850
    %v852 = vsel %vm849, %v851, %v847
    %v853 = vmul.f32 %v540, %v852
    %v854 = vrcp.pop %v644
    %v855 = vmul.f32 %v644, %v854
    %v856 = vsub.f32 1.0, %v855
    %v857 = vmul.f32 %v854, %v856
    %v858 = vadd.f32 %v854, %v857
    %vm859 = vweird.f32 %v644
    %vm860 = vweird.f32 %v854
    %vm861 = vmor %vm859, %vm860
    %v862 = vsel %vm861, %v854, %v858
    %v863 = vand.u32 2147483647, %v644
    %vm864 = vcmp.eq.f32.partialorder %v863, 8.507059e+37
    %v865 = vand.u32 %v644, 2147483648
    %v866 = vor.u32 1.1754944e-38, %v865
    %v867 = vsel %vm864, %v866, %v862
    %v868 = vmul.f32 %v542, %v867
    %v869 = vrcp.pop %v651
    %v870 = vmul.f32 %v651, %v869
    %v871 = vsub.f32 1.0, %v870
    %v872 = vmul.f32 %v869, %v871
    %v873 = vadd.f32 %v869, %v872
    %vm874 = vweird.f32 %v651
    %vm875 = vweird.f32 %v869
    %vm876 = vmor %vm874, %vm875
    %v877 = vsel %vm876, %v869, %v873
    %v878 = vand.u32 2147483647, %v651
    %vm879 = vcmp.eq.f32.partialorder %v878, 8.507059e+37
    %v880 = vand.u32 %v651, 2147483648
    %v881 = vor.u32 1.1754944e-38, %v880
    %v882 = vsel %vm879, %v881, %v877
    %v883 = vmul.f32 %v544, %v882
    %v884 = vrcp.pop %v658
    %v885 = vmul.f32 %v658, %v884
    %v886 = vsub.f32 1.0, %v885
    %v887 = vmul.f32 %v884, %v886
    %v888 = vadd.f32 %v884, %v887
    %vm889 = vweird.f32 %v658
    %vm890 = vweird.f32 %v884
    %vm891 = vmor %vm889, %vm890
    %v892 = vsel %vm891, %v884, %v888
    %v893 = vand.u32 2147483647, %v658
    %vm894 = vcmp.eq.f32.partialorder %v893, 8.507059e+37
    %v895 = vand.u32 %v658, 2147483648
    %v896 = vor.u32 1.1754944e-38, %v895
    %v897 = vsel %vm894, %v896, %v892
    %v898 = vmul.f32 %v546, %v897
    %v899 = vmul.f32 %v673, %v199
    %v900 = vmul.f32 %v688, %v199
    %v901 = vmul.f32 %v703, %v199
    %v902 = vmul.f32 %v718, %v199
    %v903 = vmul.f32 %v733, %v199
    %v904 = vmul.f32 %v748, %v199
    %v905 = vmul.f32 %v763, %v199
    %v906 = vmul.f32 %v778, %v199
    %v907 = vmul.f32 %v793, %v202
    %v908 = vmul.f32 %v808, %v202
    %v909 = vmul.f32 %v823, %v202
    %v910 = vmul.f32 %v838, %v202
    %v911 = vmul.f32 %v853, %v202
    %v912 = vmul.f32 %v868, %v202
    %v913 = vmul.f32 %v883, %v202
    %v914 = vmul.f32 %v898, %v202
    %v915 = vsel %vm128, %v899, 0.0
    %v916 = vrot.slane %v915, 4
    %v917 = vadd.f32 %v915, %v916
    %v918 = vrot.slane %v917, 2
    %v919 = vadd.f32 %v917, %v918
    %v920 = vrot.slane %v919, 1
    %v921 = vadd.f32 %v919, %v920
    %v922 = vsel %vm128, %v900, 0.0
    %v923 = vrot.slane %v922, 4
    %v924 = vadd.f32 %v922, %v923
    %v925 = vrot.slane %v924, 2
    %v926 = vadd.f32 %v924, %v925
    %v927 = vrot.slane %v926, 1
    %v928 = vadd.f32 %v926, %v927
    %v929 = vsel %vm128, %v901, 0.0
    %v930 = vrot.slane %v929, 4
    %v931 = vadd.f32 %v929, %v930
    %v932 = vrot.slane %v931, 2
    %v933 = vadd.f32 %v931, %v932
    %v934 = vrot.slane %v933, 1
    %v935 = vadd.f32 %v933, %v934
    %v936 = vsel %vm128, %v902, 0.0
    %v937 = vrot.slane %v936, 4
    %v938 = vadd.f32 %v936, %v937
    %v939 = vrot.slane %v938, 2
    %v940 = vadd.f32 %v938, %v939
    %v941 = vrot.slane %v940, 1
    %v942 = vadd.f32 %v940, %v941
    %v943 = vsel %vm128, %v903, 0.0
    %v944 = vrot.slane %v943, 4
    %v945 = vadd.f32 %v943, %v944
    %v946 = vrot.slane %v945, 2
    %v947 = vadd.f32 %v945, %v946
    %v948 = vrot.slane %v947, 1
    %v949 = vadd.f32 %v947, %v948
    %v950 = vsel %vm128, %v904, 0.0
    %v951 = vrot.slane %v950, 4
    %v952 = vadd.f32 %v950, %v951
    %v953 = vrot.slane %v952, 2
    %v954 = vadd.f32 %v952, %v953
    %v955 = vrot.slane %v954, 1
    %v956 = vadd.f32 %v954, %v955
    %v957 = vsel %vm128, %v905, 0.0
    %v958 = vrot.slane %v957, 4
    %v959 = vadd.f32 %v957, %v958
    %v960 = vrot.slane %v959, 2
    %v961 = vadd.f32 %v959, %v960
    %v962 = vrot.slane %v961, 1
    %v963 = vadd.f32 %v961, %v962
    %v964 = vsel %vm128, %v906, 0.0
    %v965 = vrot.slane %v964, 4
    %v966 = vadd.f32 %v964, %v965
    %v967 = vrot.slane %v966, 2
    %v968 = vadd.f32 %v966, %v967
    %v969 = vrot.slane %v968, 1
    %v970 = vadd.f32 %v968, %v969
    %v971 = vsel %vm128, %v907, 0.0
    %v972 = vrot.slane %v971, 4
    %v973 = vadd.f32 %v971, %v972
    %v974 = vrot.slane %v973, 2
    %v975 = vadd.f32 %v973, %v974
    %v976 = vrot.slane %v975, 1
    %v977 = vadd.f32 %v975, %v976
    %v978 = vsel %vm128, %v908, 0.0
    %v979 = vrot.slane %v978, 4
    %v980 = vadd.f32 %v978, %v979
    %v981 = vrot.slane %v980, 2
    %v982 = vadd.f32 %v980, %v981
    %v983 = vrot.slane %v982, 1
    %v984 = vadd.f32 %v982, %v983
    %v985 = vsel %vm128, %v909, 0.0
    %v986 = vrot.slane %v985, 4
    %v987 = vadd.f32 %v985, %v986
    %v988 = vrot.slane %v987, 2
    %v989 = vadd.f32 %v987, %v988
    %v990 = vrot.slane %v989, 1
    %v991 = vadd.f32 %v989, %v990
    %v992 = vsel %vm128, %v910, 0.0
    %v993 = vrot.slane %v992, 4
    %v994 = vadd.f32 %v992, %v993
    %v995 = vrot.slane %v994, 2
    %v996 = vadd.f32 %v994, %v995
    %v997 = vrot.slane %v996, 1
    %v998 = vadd.f32 %v996, %v997
    %v999 = vsel %vm128, %v911, 0.0
    %v1000 = vrot.slane %v999, 4
    %v1001 = vadd.f32 %v999, %v1000
    %v1002 = vrot.slane %v1001, 2
    %v1003 = vadd.f32 %v1001, %v1002
    %v1004 = vrot.slane %v1003, 1
    %v1005 = vadd.f32 %v1003, %v1004
    %v1006 = vsel %vm128, %v912, 0.0
    %v1007 = vrot.slane %v1006, 4
    %v1008 = vadd.f32 %v1006, %v1007
    %v1009 = vrot.slane %v1008, 2
    %v1010 = vadd.f32 %v1008, %v1009
    %v1011 = vrot.slane %v1010, 1
    %v1012 = vadd.f32 %v1010, %v1011
    %v1013 = vsel %vm128, %v913, 0.0
    %v1014 = vrot.slane %v1013, 4
    %v1015 = vadd.f32 %v1013, %v1014
    %v1016 = vrot.slane %v1015, 2
    %v1017 = vadd.f32 %v1015, %v1016
    %v1018 = vrot.slane %v1017, 1
    %v1019 = vadd.f32 %v1017, %v1018
    %v1020 = vsel %vm128, %v914, 0.0
    %v1021 = vrot.slane %v1020, 4
    %v1022 = vadd.f32 %v1020, %v1021
    %v1023 = vrot.slane %v1022, 2
    %v1024 = vadd.f32 %v1022, %v1023
    %v1025 = vrot.slane %v1024, 1
    %v1026 = vadd.f32 %v1024, %v1025
    %v1027 = vld [vmem:[#allocation10] sm:$0xff]
    %v1028 = vld [vmem:[#allocation10 + $0x8] sm:$0xff]
    %v1029 = vld [vmem:[#allocation10 + $0x10] sm:$0xff]
    %v1030 = vld [vmem:[#allocation10 + $0x18] sm:$0xff]
    %v1031 = vld [vmem:[#allocation10 + $0x20] sm:$0xff]
    %v1032 = vld [vmem:[#allocation10 + $0x28] sm:$0xff]
    %v1033 = vld [vmem:[%s5] sm:$0x1]
    %v1035 = vperm.slane %v1033, 0
    %vm1053 = vcmask 1041409
    %v1054 = vsel %vm1053, %v928, %v921
    %vm1055 = vcmask 1042434
    %v1056 = vsel %vm1055, %v935, %v1054
    %vm1057 = vcmask 1043459
    %v1058 = vsel %vm1057, %v942, %v1056
    %vm1059 = vcmask 1044484
    %v1060 = vsel %vm1059, %v949, %v1058
    %vm1061 = vcmask 1045509
    %v1062 = vsel %vm1061, %v956, %v1060
    %vm1063 = vcmask 1046534
    %v1064 = vsel %vm1063, %v963, %v1062
    %vm1065 = vcmask 1047559
    %v1066 = vsel %vm1065, %v970, %v1064
    %v1067 = vsel %vm1053, %v984, %v977
    %v1068 = vsel %vm1055, %v991, %v1067
    %v1069 = vsel %vm1057, %v998, %v1068
    %v1070 = vsel %vm1059, %v1005, %v1069
    %v1071 = vsel %vm1061, %v1012, %v1070
    %v1072 = vsel %vm1063, %v1019, %v1071
    %v1073 = vsel %vm1065, %v1026, %v1072
    %v1074 = vsel %vm128, %v1066, 0
    %v1076 = vsel %vm128, %v1073, 0
    %1078 = vmatpush.msra.mxu0 0.0
    %1079 = vmatpush.msra.mxu0 0.0
    %1080 = vmatpush.msra.mxu0 0.0
    %1081 = vmatpush.msra.mxu0 0.0
    %1082 = vmatpush.msra.mxu0 0.0
    %1083 = vmatpush.msra.mxu0 0.0
    %1084 = vmatpush.msra.mxu0 0.0
    %1085 = vmatpush.msra.mxu0 0.0
    %1086 = vmatpush.msra.mxu0 0.0
    %1087 = vmatpush.msra.mxu0 0.0
    %1088 = vmatpush.msra.mxu0 %v1032
    %1089 = vmatpush.msra.mxu0 %v1031
    %1090 = vmatpush.msra.mxu0 %v1030
    %1091 = vmatpush.msra.mxu0 %v1029
    %1092 = vmatpush.msra.mxu0 %v1028
    %1093 = vmatpush.msra.mxu0 %v1027
    %1094 = vmatmul.f32.gmra.mxu0 %v1074
    %v1095 = vpop.f32.mrf.mxu0
    %v1096 = vadd.f32 %v1035, %v1095
    %1097 = vmatmul.f32.gmra.mxu0 %v1076
    %v1098 = vpop.f32.mrf.mxu0
    %v1099 = vadd.f32 %v1035, %v1098
    %1100 = vdwg.mxu0
    %1101 = vst [vmem:[#allocation11] sm:$0xff] %v1096
    %1102 = vst [vmem:[#allocation11 + $0x8] sm:$0xff] %v1099
    // Predicated region
    $region46: #{tpu_custom_call.1} parent=1 // pred_check
      _
    $region47: #{tpu_custom_call.1} parent=1 // pred_check_branch
      %1104 = sbr.rel (0) target = $region49
    $region48: #{tpu_custom_call.1} parent=1 // pred_region
      %1106 = vsyncadd [#allocation4], 0
      %s1107 = sshll.u32 [#allocation11], 4
      %s1108 = int_to_ptr.vmem [resolvable:$true] %s1107
      %s1109 = sshll.u32 %s6, 4
      %s1110 = int_to_ptr.hbm [resolvable:$true] %s1109
      %1115 = dma.vmem_to_hbm [thread:$0]  %s1108, 256, %s1110, [#allocation4], 128, 128, 8
    $region49: #{tpu_custom_call.1} parent=1 // pred_fallthru
      _
    // Predicated region
    $region50: #{tpu_custom_call.1} parent=1 // pred_check
      _
    $region51: #{tpu_custom_call.1} parent=1 // pred_check_branch
      %1117 = sbr.rel (0) target = $region53
    $region52: #{tpu_custom_call.1} parent=1 // pred_region
      %1119 = dma.done [#allocation4], 256
    $region53: #{tpu_custom_call.1} parent=1 // pred_fallthru
      _
    %1120 = vsyncpa [#allocation3], 1
    %1121 = vsyncpa [#allocation6], 1
    %1122 = vsyncpa [#allocation9], 1
    %1123 = vsyncpa [#allocation4], 1

</llo_original>
